<compile_context>
chip_gen: v7x
topology: tpu7x:2x2x1
jax: 0.10.0
libtpu: 0.0.40
codegen_flags: <defaults>
</compile_context>

<pallas_src>
import functools

import jax
import jax.numpy as jnp
from jax import lax
from jax.experimental import pallas as pl
from jax.experimental.pallas import tpu as pltpu

LN_EPS = 1e-5
INV_SQRT2 = 0.7071067811865476


def _tap_offsets(K):
    """(dt, df) shift per conv tap, matching the weight flattening order.

    Weights are flattened via transpose(W, (0, 2, 3, 1)) -> (Cout, kF, kT, Cin),
    i.e. tap index i = kf*K + kt (kf: feature-kernel, kt: time-kernel index).
    """
    pad = K // 2
    return [(kt - pad, kf - pad) for kf in range(K) for kt in range(K)]


def _default_batch_block(B):
    """Per-chip batch block: fused on single-TC v5e/v6e, B//2 on dual-TC v7x.

    Capped at 8 so the kron(I_BB, w) conv weight and in-register live ranges
    stay small.  Falls back to the fused block if the device is unknown.
    """
    try:
        kind = jax.devices()[0].device_kind.lower()
    except Exception:  # pragma: no cover - defensive
        kind = ""
    max_bb = max(1, B // 2) if "v7" in kind else B   # v7x: keep >=2 parallel steps
    max_bb = min(max_bb, 8)
    bb = 1
    for cand in range(1, max_bb + 1):
        if B % cand == 0:
            bb = cand
    return bb


def _make_kernel(C, Td, Fd, K, BB):
    TF = Td * Fd
    BBC = BB * C
    inv_f = 1.0 / float(Fd)
    # Lane shift per tap: rolled[p] = v[p + dt*F + df (mod TF)]; sources that
    # fall outside the valid (t, f) range are zeroed by the precomputed masks,
    # which reproduces 'same' zero padding exactly.
    shifts = [(-(dt * Fd + df)) % TF for (dt, df) in _tap_offsets(K)]

    def kernel(x_ref, seg_ref, mask_ref, g1_ref, be1_ref, g2_ref, be2_ref,
               w1_ref, b1_ref, w2_ref, b2_ref, o_ref):

        def ln_gelu(v, g_ref, b_ref):
            # Fused mean / E[x^2] over the F-wide feature groups: ONE MXU matmul
            # of [v ; v*v] (2*BB*C rows) against the 0/1 segment matrix.  The
            # seg ref is read (and bf16->f32 upcast) at the use site.
            stacked = jnp.concatenate([v, v * v], axis=0)          # (2*BBC, TF)
            sums = jnp.dot(stacked, seg_ref[...].astype(jnp.float32),
                           preferred_element_type=jnp.float32)
            mean = sums[:BBC] * inv_f
            var = sums[BBC:] * inv_f - mean * mean
            h = (v - mean) * lax.rsqrt(var + LN_EPS) * g_ref[...] + b_ref[...]
            # exact erf GELU (torch F.gelu default) -> EUP
            return 0.5 * h * (1.0 + lax.erf(h * INV_SQRT2))

        def conv(v, w_ref, b_ref):
            # 'same' Conv2d over the whole (BB*C, TF) block as ONE matmul: the
            # im2col patch (K*K*BB*C, TF) lives entirely in registers (K*K lane
            # rolls on the XLU + one concat + one mask multiply); weights were
            # pre-kron'ed with I_BB so batch stays on the sublane axis.
            taps = [v if s == 0 else pltpu.roll(v, shift=s, axis=1)
                    for s in shifts]
            patch = jnp.concatenate(taps, axis=0) * mask_ref[...]
            return jnp.dot(w_ref[...], patch,
                           preferred_element_type=jnp.float32) + b_ref[...]

        a1 = ln_gelu(x_ref[0].astype(jnp.float32), g1_ref, be1_ref)
        y = conv(a1, w1_ref, b1_ref)
        a2 = ln_gelu(y, g2_ref, be2_ref)
        z = conv(a2, w2_ref, b2_ref)
        # residual: re-read x from VMEM (cheap vld) instead of keeping it live.
        o_ref[0] = (z + x_ref[0].astype(jnp.float32)).astype(o_ref.dtype)

    return kernel


@functools.partial(jax.jit, static_argnames=("kernel_size", "batch_block"))
def _forward_impl(x, params, kernel_size, batch_block):
    g1, be1, g2, be2, w1, b1, w2, b2 = params
    B, C, Fd, Td = x.shape
    K = kernel_size
    TF = Td * Fd
    BB = batch_block
    BBC = BB * C
    assert B % BB == 0
    assert w1.shape == (C, C, K, K) and w2.shape == (C, C, K, K)
    f32 = jnp.float32

    # ---- free layout plumbing in XLA (outside the kernel) ----
    # NCHW (B, C, F, T) -> feature-minor, lane-dense blocks (B//BB, BB*C, T*F).
    x_blk = jnp.transpose(x, (0, 1, 3, 2)).reshape(B // BB, BBC, TF)

    # LayerNorm affine pre-broadcast to full (BB*C, T*F) elementwise operands.
    def ln_param(p):
        return jnp.broadcast_to(jnp.tile(p.astype(f32), Td)[None, :], (BBC, TF))

    g1r, be1r, g2r, be2r = [ln_param(p) for p in (g1, be1, g2, be2)]

    # Conv weights: (Cout, Cin, kF, kT) -> (Cout, K*K, Cin), then kron'ed with
    # I_BB so a single matmul convolves the whole batch block:
    #   W_big[b*C+co, i*BB*C + b'*C + ci] = (b == b') * w[co, ci, kf, kt].
    eye_bb = jnp.eye(BB, dtype=f32)

    def conv_w(w):
        w_tap = jnp.transpose(w.astype(f32), (0, 2, 3, 1)).reshape(C, K * K, C)
        return jnp.einsum("xy,oic->xoiyc", eye_bb, w_tap).reshape(BBC, K * K * BBC)

    def conv_b(b):
        return jnp.broadcast_to(jnp.tile(b.astype(f32), BB)[:, None], (BBC, TF))

    w1f, w2f = conv_w(w1), conv_w(w2)
    b1r, b2r = conv_b(b1), conv_b(b2)

    # 0/1 same-feature-group matrix; bf16 is exact for 0/1 values and halves
    # the footprint of the largest constant.  (For much larger T*F, replace
    # this dense (TF, TF) operand with a block-structured reduction.)
    pidx = jnp.arange(TF)
    seg = (pidx[:, None] // Fd == pidx[None, :] // Fd).astype(jnp.bfloat16)

    # Tap-validity masks pre-broadcast to the full patch rows (K*K*BB*C, TF),
    # so the in-kernel masking is a single pure-elementwise multiply.
    t_idx, f_idx = pidx // Fd, pidx % Fd
    rows = []
    for dt, df in _tap_offsets(K):
        ok = ((t_idx + dt >= 0) & (t_idx + dt < Td) &
              (f_idx + df >= 0) & (f_idx + df < Fd))
        rows.append(jnp.broadcast_to(ok.astype(f32)[None, :], (BBC, TF)))
    mask_full = jnp.concatenate(rows, axis=0)                  # (K*K*BBC, TF)

    kernel = _make_kernel(C, Td, Fd, K, BB)

    def const_spec(shape):
        return pl.BlockSpec(shape, lambda i: (0,) * len(shape))

    out_blk = pl.pallas_call(
        kernel,
        out_shape=jax.ShapeDtypeStruct((B // BB, BBC, TF), x.dtype),
        grid_spec=pltpu.PrefetchScalarGridSpec(
            num_scalar_prefetch=0,
            grid=(B // BB,),
            in_specs=[
                pl.BlockSpec((1, BBC, TF), lambda i: (i, 0, 0)),        # x
                const_spec((TF, TF)),                                   # seg
                const_spec((K * K * BBC, TF)),                          # masks
                const_spec((BBC, TF)), const_spec((BBC, TF)),           # ln1 g/b
                const_spec((BBC, TF)), const_spec((BBC, TF)),           # ln2 g/b
                const_spec((BBC, K * K * BBC)), const_spec((BBC, TF)),  # conv1
                const_spec((BBC, K * K * BBC)), const_spec((BBC, TF)),  # conv2
            ],
            out_specs=pl.BlockSpec((1, BBC, TF), lambda i: (i, 0, 0)),
        ),
        compiler_params=pltpu.CompilerParams(
            dimension_semantics=("parallel",),
            vmem_limit_bytes=32 * 1024 * 1024),
    )(x_blk, seg, mask_full, g1r, be1r, g2r, be2r, w1f, b1r, w2f, b2r)

    # back to (B, C, F, T)
    return jnp.transpose(out_blk.reshape(B, C, Td, Fd), (0, 1, 3, 2))


def residual_cnn_forward(x, params, kernel_size, batch_block=None):
    """x: (batch, channel, feature, time).  batch_block=None -> per-chip auto."""
    if batch_block is None:
        batch_block = _default_batch_block(x.shape[0])
    return _forward_impl(x, params, kernel_size, batch_block)


def reference_forward(x, params):
    """Pure-JAX reference mirroring the PyTorch forward (eval mode)."""
    g1, be1, g2, be2, w1, b1, w2, b2 = params

    def ln_feat(v, g, b):  # v: (B, C, F, T), normalize over F
        mean = jnp.mean(v, axis=2, keepdims=True)
        var = jnp.mean((v - mean) ** 2, axis=2, keepdims=True)
        vn = (v - mean) / jnp.sqrt(var + LN_EPS)
        return vn * g[None, None, :, None] + b[None, None, :, None]

    def gelu(v):
        return 0.5 * v * (1.0 + lax.erf(v / jnp.sqrt(2.0)))

    def conv(v, w, b):
        pad = w.shape[-1] // 2
        y = lax.conv_general_dilated(
            v, w, window_strides=(1, 1), padding=[(pad, pad), (pad, pad)],
            dimension_numbers=("NCHW", "OIHW", "NCHW"))
        return y + b[None, :, None, None]

    y = conv(gelu(ln_feat(x, g1, be1)), w1, b1)
    y = conv(gelu(ln_feat(y, g2, be2)), w2, b2)
    return y + x


if __name__ == "__main__":
    # ResidualCNN(in_channels=4, out_channels=4, kernel=3, stride=1,
    #             dropout=0.0, n_feats=16); time = 8  ->  x: (2, 4, 16, 8),
    # so T*F = 128 (lane-dense).
    B, C, n_feats, T, K = 2, 4, 16, 8, 3

    key = jax.random.PRNGKey(0)
    ks = jax.random.split(key, 9)

    x = jax.random.normal(ks[0], (B, C, n_feats, T), dtype=jnp.float32)

    fan_in = C * K * K
    scale = 1.0 / jnp.sqrt(jnp.float32(fan_in))
    params = (
        1.0 + 0.1 * jax.random.normal(ks[1], (n_feats,), jnp.float32),  # ln1 g
        0.1 * jax.random.normal(ks[2], (n_feats,), jnp.float32),        # ln1 b
        1.0 + 0.1 * jax.random.normal(ks[3], (n_feats,), jnp.float32),  # ln2 g
        0.1 * jax.random.normal(ks[4], (n_feats,), jnp.float32),        # ln2 b
        scale * jax.random.normal(ks[5], (C, C, K, K), jnp.float32),    # conv1 w
        scale * jax.random.normal(ks[6], (C,), jnp.float32),            # conv1 b
        scale * jax.random.normal(ks[7], (C, C, K, K), jnp.float32),    # conv2 w
        scale * jax.random.normal(ks[8], (C,), jnp.float32),            # conv2 b
    )

    ref = jax.block_until_ready(reference_forward(x, params))

    def check(out, tag):
        assert out.shape == (B, C, n_feats, T), (tag, out.shape)
        err = float(jnp.max(jnp.abs(out - ref)))
        assert err < 3e-4, (tag, err)

    # Auto batch_block (fused on single-TC v5e/v6e, B//2 on dual-TC v7x).
    check(jax.block_until_ready(
        residual_cnn_forward(x, params, kernel_size=K)), "auto")
    # Explicit variants: one parallel step per batch element / fused batch.
    check(jax.block_until_ready(
        residual_cnn_forward(x, params, kernel_size=K, batch_block=1)), "bb=1")
    check(jax.block_until_ready(
        residual_cnn_forward(x, params, kernel_size=K, batch_block=B)), "bb=B")

    print("KERNEL_OK")
</pallas_src>

<mosaic_0001>
module attributes {stable_mosaic.version = 11 : i64} {
  func.func @kernel(%arg0: i32, %arg1: memref<1x8x128xf32, #tpu.memory_space<vmem>>, %arg2: memref<128x128xbf16, #tpu.memory_space<vmem>>, %arg3: memref<72x128xf32, #tpu.memory_space<vmem>>, %arg4: memref<8x128xf32, #tpu.memory_space<vmem>>, %arg5: memref<8x128xf32, #tpu.memory_space<vmem>>, %arg6: memref<8x128xf32, #tpu.memory_space<vmem>>, %arg7: memref<8x128xf32, #tpu.memory_space<vmem>>, %arg8: memref<8x72xf32, #tpu.memory_space<vmem>>, %arg9: memref<8x128xf32, #tpu.memory_space<vmem>>, %arg10: memref<8x72xf32, #tpu.memory_space<vmem>>, %arg11: memref<8x128xf32, #tpu.memory_space<vmem>>, %arg12: memref<1x8x128xf32, #tpu.memory_space<vmem>>) attributes {dimension_semantics = [#tpu.dimension_semantics<parallel>], iteration_bounds = array<i64: 1>, scalar_prefetch = 0 : i64, scratch_operands = 0 : i64, tpu.core_type = #tpu.core_type<tc>, window_params = [{transform_indices = @transform_0, window_bounds = array<i64: 1, 8, 128>}, {pipeline_mode = #tpu.pipeline_mode<synchronous>, transform_indices = @transform_1, window_bounds = array<i64: 128, 128>}, {pipeline_mode = #tpu.pipeline_mode<synchronous>, transform_indices = @transform_2, window_bounds = array<i64: 72, 128>}, {pipeline_mode = #tpu.pipeline_mode<synchronous>, transform_indices = @transform_3, window_bounds = array<i64: 8, 128>}, {pipeline_mode = #tpu.pipeline_mode<synchronous>, transform_indices = @transform_4, window_bounds = array<i64: 8, 128>}, {pipeline_mode = #tpu.pipeline_mode<synchronous>, transform_indices = @transform_5, window_bounds = array<i64: 8, 128>}, {pipeline_mode = #tpu.pipeline_mode<synchronous>, transform_indices = @transform_6, window_bounds = array<i64: 8, 128>}, {pipeline_mode = #tpu.pipeline_mode<synchronous>, transform_indices = @transform_7, window_bounds = array<i64: 8, 72>}, {pipeline_mode = #tpu.pipeline_mode<synchronous>, transform_indices = @transform_8, window_bounds = array<i64: 8, 128>}, {pipeline_mode = #tpu.pipeline_mode<synchronous>, transform_indices = @transform_9, window_bounds = array<i64: 8, 72>}, {pipeline_mode = #tpu.pipeline_mode<synchronous>, transform_indices = @transform_10, window_bounds = array<i64: 8, 128>}, {transform_indices = @transform_11, window_bounds = array<i64: 1, 8, 128>}]} {
    %c0 = arith.constant 0 : index
    %c0_0 = arith.constant 0 : index
    %c0_1 = arith.constant 0 : index
    %0 = vector.load %arg1[%c0, %c0_0, %c0_1] : memref<1x8x128xf32, #tpu.memory_space<vmem>>, vector<1x8x128xf32>
    %1 = vector.shape_cast %0 : vector<1x8x128xf32> to vector<8x128xf32>
    %2 = arith.mulf %1, %1 : vector<8x128xf32>
    %3 = tpu.concatenate %1, %2 in 0 : vector<8x128xf32>, vector<8x128xf32> -> vector<16x128xf32>
    %c0_2 = arith.constant 0 : index
    %c0_3 = arith.constant 0 : index
    %4 = vector.load %arg2[%c0_2, %c0_3] : memref<128x128xbf16, #tpu.memory_space<vmem>>, vector<128x128xbf16>
    %5 = arith.extf %4 : vector<128x128xbf16> to vector<128x128xf32>
    %cst = arith.constant dense<0.000000e+00> : vector<16x128xf32>
    %6 = tpu.matmul %3, %5, %cst {dimension_numbers = #tpu.dot_dimension_numbers<[1], [0], [0], [1], [0, 0, 1, 1], [], []>} : vector<16x128xf32>, vector<128x128xf32>, vector<16x128xf32> -> vector<16x128xf32>
    %7 = vector.extract_strided_slice %6 {offsets = [0, 0], sizes = [8, 128], strides = [1, 1]} : vector<16x128xf32> to vector<8x128xf32>
    %cst_4 = arith.constant 6.250000e-02 : f32
    %8 = vector.broadcast %cst_4 : f32 to vector<8x128xf32>
    %9 = arith.mulf %7, %8 : vector<8x128xf32>
    %10 = vector.extract_strided_slice %6 {offsets = [8, 0], sizes = [8, 128], strides = [1, 1]} : vector<16x128xf32> to vector<8x128xf32>
    %cst_5 = arith.constant 6.250000e-02 : f32
    %11 = vector.broadcast %cst_5 : f32 to vector<8x128xf32>
    %12 = arith.mulf %10, %11 : vector<8x128xf32>
    %13 = arith.mulf %9, %9 : vector<8x128xf32>
    %14 = arith.subf %12, %13 : vector<8x128xf32>
    %15 = arith.subf %1, %9 : vector<8x128xf32>
    %cst_6 = arith.constant 9.99999974E-6 : f32
    %16 = vector.broadcast %cst_6 : f32 to vector<8x128xf32>
    %17 = arith.addf %14, %16 : vector<8x128xf32>
    %18 = math.rsqrt %17 : vector<8x128xf32>
    %19 = arith.mulf %15, %18 : vector<8x128xf32>
    %c0_7 = arith.constant 0 : index
    %c0_8 = arith.constant 0 : index
    %20 = vector.load %arg4[%c0_7, %c0_8] : memref<8x128xf32, #tpu.memory_space<vmem>>, vector<8x128xf32>
    %21 = arith.mulf %19, %20 : vector<8x128xf32>
    %c0_9 = arith.constant 0 : index
    %c0_10 = arith.constant 0 : index
    %22 = vector.load %arg5[%c0_9, %c0_10] : memref<8x128xf32, #tpu.memory_space<vmem>>, vector<8x128xf32>
    %23 = arith.addf %21, %22 : vector<8x128xf32>
    %cst_11 = arith.constant 5.000000e-01 : f32
    %24 = vector.broadcast %cst_11 : f32 to vector<8x128xf32>
    %25 = arith.mulf %24, %23 : vector<8x128xf32>
    %cst_12 = arith.constant 0.707106769 : f32
    %26 = vector.broadcast %cst_12 : f32 to vector<8x128xf32>
    %27 = arith.mulf %23, %26 : vector<8x128xf32>
    %28 = math.erf %27 : vector<8x128xf32>
    %cst_13 = arith.constant 1.000000e+00 : f32
    %29 = vector.broadcast %cst_13 : f32 to vector<8x128xf32>
    %30 = arith.addf %29, %28 : vector<8x128xf32>
    %31 = arith.mulf %25, %30 : vector<8x128xf32>
    %c17_i32 = arith.constant 17 : i32
    %32 = tpu.dynamic_rotate %31 by %c17_i32 dim 1 : vector<8x128xf32>, i32 -> vector<8x128xf32>
    %c1_i32 = arith.constant 1 : i32
    %33 = tpu.dynamic_rotate %31 by %c1_i32 dim 1 : vector<8x128xf32>, i32 -> vector<8x128xf32>
    %c113_i32 = arith.constant 113 : i32
    %34 = tpu.dynamic_rotate %31 by %c113_i32 dim 1 : vector<8x128xf32>, i32 -> vector<8x128xf32>
    %c16_i32 = arith.constant 16 : i32
    %35 = tpu.dynamic_rotate %31 by %c16_i32 dim 1 : vector<8x128xf32>, i32 -> vector<8x128xf32>
    %c112_i32 = arith.constant 112 : i32
    %36 = tpu.dynamic_rotate %31 by %c112_i32 dim 1 : vector<8x128xf32>, i32 -> vector<8x128xf32>
    %c15_i32 = arith.constant 15 : i32
    %37 = tpu.dynamic_rotate %31 by %c15_i32 dim 1 : vector<8x128xf32>, i32 -> vector<8x128xf32>
    %c127_i32 = arith.constant 127 : i32
    %38 = tpu.dynamic_rotate %31 by %c127_i32 dim 1 : vector<8x128xf32>, i32 -> vector<8x128xf32>
    %c111_i32 = arith.constant 111 : i32
    %39 = tpu.dynamic_rotate %31 by %c111_i32 dim 1 : vector<8x128xf32>, i32 -> vector<8x128xf32>
    %40 = tpu.concatenate %32, %33, %34, %35, %31, %36, %37, %38, %39 in 0 : vector<8x128xf32>, vector<8x128xf32>, vector<8x128xf32>, vector<8x128xf32>, vector<8x128xf32>, vector<8x128xf32>, vector<8x128xf32>, vector<8x128xf32>, vector<8x128xf32> -> vector<72x128xf32>
    %c0_14 = arith.constant 0 : index
    %c0_15 = arith.constant 0 : index
    %41 = vector.load %arg3[%c0_14, %c0_15] : memref<72x128xf32, #tpu.memory_space<vmem>>, vector<72x128xf32>
    %42 = arith.mulf %40, %41 : vector<72x128xf32>
    %c0_16 = arith.constant 0 : index
    %c0_17 = arith.constant 0 : index
    %43 = vector.load %arg8[%c0_16, %c0_17] : memref<8x72xf32, #tpu.memory_space<vmem>>, vector<8x72xf32>
    %cst_18 = arith.constant dense<0.000000e+00> : vector<8x128xf32>
    %44 = tpu.matmul %43, %42, %cst_18 {dimension_numbers = #tpu.dot_dimension_numbers<[1], [0], [0], [1], [0, 0, 1, 1], [], []>} : vector<8x72xf32>, vector<72x128xf32>, vector<8x128xf32> -> vector<8x128xf32>
    %c0_19 = arith.constant 0 : index
    %c0_20 = arith.constant 0 : index
    %45 = vector.load %arg9[%c0_19, %c0_20] : memref<8x128xf32, #tpu.memory_space<vmem>>, vector<8x128xf32>
    %46 = arith.addf %44, %45 : vector<8x128xf32>
    %47 = arith.mulf %46, %46 : vector<8x128xf32>
    %48 = tpu.concatenate %46, %47 in 0 : vector<8x128xf32>, vector<8x128xf32> -> vector<16x128xf32>
    %c0_21 = arith.constant 0 : index
    %c0_22 = arith.constant 0 : index
    %49 = vector.load %arg2[%c0_21, %c0_22] : memref<128x128xbf16, #tpu.memory_space<vmem>>, vector<128x128xbf16>
    %50 = arith.extf %49 : vector<128x128xbf16> to vector<128x128xf32>
    %cst_23 = arith.constant dense<0.000000e+00> : vector<16x128xf32>
    %51 = tpu.matmul %48, %50, %cst_23 {dimension_numbers = #tpu.dot_dimension_numbers<[1], [0], [0], [1], [0, 0, 1, 1], [], []>} : vector<16x128xf32>, vector<128x128xf32>, vector<16x128xf32> -> vector<16x128xf32>
    %52 = vector.extract_strided_slice %51 {offsets = [0, 0], sizes = [8, 128], strides = [1, 1]} : vector<16x128xf32> to vector<8x128xf32>
    %cst_24 = arith.constant 6.250000e-02 : f32
    %53 = vector.broadcast %cst_24 : f32 to vector<8x128xf32>
    %54 = arith.mulf %52, %53 : vector<8x128xf32>
    %55 = vector.extract_strided_slice %51 {offsets = [8, 0], sizes = [8, 128], strides = [1, 1]} : vector<16x128xf32> to vector<8x128xf32>
    %cst_25 = arith.constant 6.250000e-02 : f32
    %56 = vector.broadcast %cst_25 : f32 to vector<8x128xf32>
    %57 = arith.mulf %55, %56 : vector<8x128xf32>
    %58 = arith.mulf %54, %54 : vector<8x128xf32>
    %59 = arith.subf %57, %58 : vector<8x128xf32>
    %60 = arith.subf %46, %54 : vector<8x128xf32>
    %cst_26 = arith.constant 9.99999974E-6 : f32
    %61 = vector.broadcast %cst_26 : f32 to vector<8x128xf32>
    %62 = arith.addf %59, %61 : vector<8x128xf32>
    %63 = math.rsqrt %62 : vector<8x128xf32>
    %64 = arith.mulf %60, %63 : vector<8x128xf32>
    %c0_27 = arith.constant 0 : index
    %c0_28 = arith.constant 0 : index
    %65 = vector.load %arg6[%c0_27, %c0_28] : memref<8x128xf32, #tpu.memory_space<vmem>>, vector<8x128xf32>
    %66 = arith.mulf %64, %65 : vector<8x128xf32>
    %c0_29 = arith.constant 0 : index
    %c0_30 = arith.constant 0 : index
    %67 = vector.load %arg7[%c0_29, %c0_30] : memref<8x128xf32, #tpu.memory_space<vmem>>, vector<8x128xf32>
    %68 = arith.addf %66, %67 : vector<8x128xf32>
    %cst_31 = arith.constant 5.000000e-01 : f32
    %69 = vector.broadcast %cst_31 : f32 to vector<8x128xf32>
    %70 = arith.mulf %69, %68 : vector<8x128xf32>
    %cst_32 = arith.constant 0.707106769 : f32
    %71 = vector.broadcast %cst_32 : f32 to vector<8x128xf32>
    %72 = arith.mulf %68, %71 : vector<8x128xf32>
    %73 = math.erf %72 : vector<8x128xf32>
    %cst_33 = arith.constant 1.000000e+00 : f32
    %74 = vector.broadcast %cst_33 : f32 to vector<8x128xf32>
    %75 = arith.addf %74, %73 : vector<8x128xf32>
    %76 = arith.mulf %70, %75 : vector<8x128xf32>
    %c17_i32_34 = arith.constant 17 : i32
    %77 = tpu.dynamic_rotate %76 by %c17_i32_34 dim 1 : vector<8x128xf32>, i32 -> vector<8x128xf32>
    %c1_i32_35 = arith.constant 1 : i32
    %78 = tpu.dynamic_rotate %76 by %c1_i32_35 dim 1 : vector<8x128xf32>, i32 -> vector<8x128xf32>
    %c113_i32_36 = arith.constant 113 : i32
    %79 = tpu.dynamic_rotate %76 by %c113_i32_36 dim 1 : vector<8x128xf32>, i32 -> vector<8x128xf32>
    %c16_i32_37 = arith.constant 16 : i32
    %80 = tpu.dynamic_rotate %76 by %c16_i32_37 dim 1 : vector<8x128xf32>, i32 -> vector<8x128xf32>
    %c112_i32_38 = arith.constant 112 : i32
    %81 = tpu.dynamic_rotate %76 by %c112_i32_38 dim 1 : vector<8x128xf32>, i32 -> vector<8x128xf32>
    %c15_i32_39 = arith.constant 15 : i32
    %82 = tpu.dynamic_rotate %76 by %c15_i32_39 dim 1 : vector<8x128xf32>, i32 -> vector<8x128xf32>
    %c127_i32_40 = arith.constant 127 : i32
    %83 = tpu.dynamic_rotate %76 by %c127_i32_40 dim 1 : vector<8x128xf32>, i32 -> vector<8x128xf32>
    %c111_i32_41 = arith.constant 111 : i32
    %84 = tpu.dynamic_rotate %76 by %c111_i32_41 dim 1 : vector<8x128xf32>, i32 -> vector<8x128xf32>
    %85 = tpu.concatenate %77, %78, %79, %80, %76, %81, %82, %83, %84 in 0 : vector<8x128xf32>, vector<8x128xf32>, vector<8x128xf32>, vector<8x128xf32>, vector<8x128xf32>, vector<8x128xf32>, vector<8x128xf32>, vector<8x128xf32>, vector<8x128xf32> -> vector<72x128xf32>
    %c0_42 = arith.constant 0 : index
    %c0_43 = arith.constant 0 : index
    %86 = vector.load %arg3[%c0_42, %c0_43] : memref<72x128xf32, #tpu.memory_space<vmem>>, vector<72x128xf32>
    %87 = arith.mulf %85, %86 : vector<72x128xf32>
    %c0_44 = arith.constant 0 : index
    %c0_45 = arith.constant 0 : index
    %88 = vector.load %arg10[%c0_44, %c0_45] : memref<8x72xf32, #tpu.memory_space<vmem>>, vector<8x72xf32>
    %cst_46 = arith.constant dense<0.000000e+00> : vector<8x128xf32>
    %89 = tpu.matmul %88, %87, %cst_46 {dimension_numbers = #tpu.dot_dimension_numbers<[1], [0], [0], [1], [0, 0, 1, 1], [], []>} : vector<8x72xf32>, vector<72x128xf32>, vector<8x128xf32> -> vector<8x128xf32>
    %c0_47 = arith.constant 0 : index
    %c0_48 = arith.constant 0 : index
    %90 = vector.load %arg11[%c0_47, %c0_48] : memref<8x128xf32, #tpu.memory_space<vmem>>, vector<8x128xf32>
    %91 = arith.addf %89, %90 : vector<8x128xf32>
    %c0_49 = arith.constant 0 : index
    %c0_50 = arith.constant 0 : index
    %c0_51 = arith.constant 0 : index
    %92 = vector.load %arg1[%c0_49, %c0_50, %c0_51] : memref<1x8x128xf32, #tpu.memory_space<vmem>>, vector<1x8x128xf32>
    %93 = vector.shape_cast %92 : vector<1x8x128xf32> to vector<8x128xf32>
    %94 = arith.addf %91, %93 : vector<8x128xf32>
    %c0_52 = arith.constant 0 : index
    %c0_53 = arith.constant 0 : index
    %c0_54 = arith.constant 0 : index
    %95 = vector.load %arg12[%c0_52, %c0_53, %c0_54] : memref<1x8x128xf32, #tpu.memory_space<vmem>>, vector<1x8x128xf32>
    %96 = vector.shape_cast %95 : vector<1x8x128xf32> to vector<8x128xf32>
    %97 = vector.shape_cast %94 : vector<8x128xf32> to vector<1x8x128xf32>
    tpu.vector_store %arg12[%c0_52, %c0_53, %c0_54], %97 {strides = array<i32>} : memref<1x8x128xf32, #tpu.memory_space<vmem>>, vector<1x8x128xf32>,
    return
  }
  func.func @transform_0(%arg0: i32) -> (i32, i32, i32) {
    %c0_i32 = arith.constant 0 : i32
    %c0_i32_0 = arith.constant 0 : i32
    %c0_i32_1 = arith.constant 0 : i32
    return %arg0, %c0_i32, %c0_i32_0 : i32, i32, i32
  }
  func.func @transform_1(%arg0: i32) -> (i32, i32) {
    %c0_i32 = arith.constant 0 : i32
    %c0_i32_0 = arith.constant 0 : i32
    %c0_i32_1 = arith.constant 0 : i32
    return %c0_i32, %c0_i32_0 : i32, i32
  }
  func.func @transform_2(%arg0: i32) -> (i32, i32) {
    %c0_i32 = arith.constant 0 : i32
    %c0_i32_0 = arith.constant 0 : i32
    %c0_i32_1 = arith.constant 0 : i32
    return %c0_i32, %c0_i32_0 : i32, i32
  }
  func.func @transform_3(%arg0: i32) -> (i32, i32) {
    %c0_i32 = arith.constant 0 : i32
    %c0_i32_0 = arith.constant 0 : i32
    %c0_i32_1 = arith.constant 0 : i32
    return %c0_i32, %c0_i32_0 : i32, i32
  }
  func.func @transform_4(%arg0: i32) -> (i32, i32) {
    %c0_i32 = arith.constant 0 : i32
    %c0_i32_0 = arith.constant 0 : i32
    %c0_i32_1 = arith.constant 0 : i32
    return %c0_i32, %c0_i32_0 : i32, i32
  }
  func.func @transform_5(%arg0: i32) -> (i32, i32) {
    %c0_i32 = arith.constant 0 : i32
    %c0_i32_0 = arith.constant 0 : i32
    %c0_i32_1 = arith.constant 0 : i32
    return %c0_i32, %c0_i32_0 : i32, i32
  }
  func.func @transform_6(%arg0: i32) -> (i32, i32) {
    %c0_i32 = arith.constant 0 : i32
    %c0_i32_0 = arith.constant 0 : i32
    %c0_i32_1 = arith.constant 0 : i32
    return %c0_i32, %c0_i32_0 : i32, i32
  }
  func.func @transform_7(%arg0: i32) -> (i32, i32) {
    %c0_i32 = arith.constant 0 : i32
    %c0_i32_0 = arith.constant 0 : i32
    %c0_i32_1 = arith.constant 0 : i32
    return %c0_i32, %c0_i32_0 : i32, i32
  }
  func.func @transform_8(%arg0: i32) -> (i32, i32) {
    %c0_i32 = arith.constant 0 : i32
    %c0_i32_0 = arith.constant 0 : i32
    %c0_i32_1 = arith.constant 0 : i32
    return %c0_i32, %c0_i32_0 : i32, i32
  }
  func.func @transform_9(%arg0: i32) -> (i32, i32) {
    %c0_i32 = arith.constant 0 : i32
    %c0_i32_0 = arith.constant 0 : i32
    %c0_i32_1 = arith.constant 0 : i32
    return %c0_i32, %c0_i32_0 : i32, i32
  }
  func.func @transform_10(%arg0: i32) -> (i32, i32) {
    %c0_i32 = arith.constant 0 : i32
    %c0_i32_0 = arith.constant 0 : i32
    %c0_i32_1 = arith.constant 0 : i32
    return %c0_i32, %c0_i32_0 : i32, i32
  }
  func.func @transform_11(%arg0: i32) -> (i32, i32, i32) {
    %c0_i32 = arith.constant 0 : i32
    %c0_i32_0 = arith.constant 0 : i32
    %c0_i32_1 = arith.constant 0 : i32
    return %arg0, %c0_i32, %c0_i32_0 : i32, i32, i32
  }
}

</mosaic_0001>

<llo_original>
// kernel: tile.33
$region0: #{tile.33}
  #allocation0 [shape = 's32[1]{0}', space=sflag, size = 0x4, scoped, tag = 'scoped memory for tile.33']
  %s0 = inlined_call_operand.vmem [shape: f32[16], index: 0, kind: input, shape index: {}]
  %s1 = inlined_call_operand.vmem [shape: f32[8,16], index: 1, kind: output, shape index: {}]
  // Predicated region
  $region2: #{tile.33} parent=0 // pred_check
    _
  $region3: #{tile.33} parent=0 // pred_check_branch
    %3 = sbr.rel (0) target = $region5
  $region4: #{tile.33} parent=0 // pred_region
    _
  $region5: #{tile.33} parent=0 // pred_fallthru
    _
  %v4 = vld [vmem:[%s0] ss:$0 sm:$0xff]
  %5 = vst [vmem:[%s1] sm:$0xff] %v4

// kernel: tile.53
$region0: #{tile.53}
  #allocation0 [shape = 's32[1]{0}', space=sflag, size = 0x4, scoped, tag = 'scoped memory for tile.53']
  %s0 = inlined_call_operand.vmem [shape: f32[4], index: 0, kind: input, shape index: {}]
  %s1 = inlined_call_operand.vmem [shape: f32[2,4], index: 1, kind: output, shape index: {}]
  // Predicated region
  $region2: #{tile.53} parent=0 // pred_check
    _
  $region3: #{tile.53} parent=0 // pred_check_branch
    %3 = sbr.rel (0) target = $region5
  $region4: #{tile.53} parent=0 // pred_region
    _
  $region5: #{tile.53} parent=0 // pred_fallthru
    _
  %v4 = vld [vmem:[%s0] ss:$0 sm:$0xff]
  %5 = vst [vmem:[%s1] sm:$0x3] %v4

// kernel: _forward_impl.1
$region0: #{_forward_impl.1}
  #allocation0 [shape = 'u32[]', space=smem, size = 0x4, offset = 0x4, fixed_abs, tag = 'smem constant byte address 0x4 - core index']
  #allocation1 [shape = 'u32[144,128]{1,0:T(1,128)}', space=vmem, size = 0x12000, scoped, tag = 'internal scratch']
  %s0 = inlined_call_operand.vmem [shape: f32[1,8,128], index: 0, kind: input, shape index: {}]
  %s1 = inlined_call_operand.vmem [shape: bf16[128,128], index: 1, kind: input, shape index: {}]
  %s2 = inlined_call_operand.vmem [shape: f32[72,128], index: 2, kind: input, shape index: {}]
  %s3 = inlined_call_operand.vmem [shape: f32[8,128], index: 3, kind: input, shape index: {}]
  %s4 = inlined_call_operand.vmem [shape: f32[8,128], index: 4, kind: input, shape index: {}]
  %s5 = inlined_call_operand.vmem [shape: f32[8,128], index: 5, kind: input, shape index: {}]
  %s6 = inlined_call_operand.vmem [shape: f32[8,128], index: 6, kind: input, shape index: {}]
  %s7 = inlined_call_operand.vmem [shape: f32[8,72], index: 7, kind: input, shape index: {}]
  %s8 = inlined_call_operand.vmem [shape: f32[8,128], index: 8, kind: input, shape index: {}]
  %s9 = inlined_call_operand.vmem [shape: f32[8,72], index: 9, kind: input, shape index: {}]
  %s10 = inlined_call_operand.vmem [shape: f32[8,128], index: 10, kind: input, shape index: {}]
  %s11 = inlined_call_operand.vmem [shape: f32[1,8,128], index: 11, kind: output, shape index: {}]
  %s12 = sld [smem:[#allocation0]]
  $region54: #{_forward_impl.1} parent=0
    _
  %s14 = ssub.s32 1, %s12
  %s15 = scalar_select 0, %s14, %s12
  // Predicated region
  $region2: #{_forward_impl.1} parent=0 // pred_check
    _
  $region3: #{_forward_impl.1} parent=0 // pred_check_branch
    %17 = sbr.rel (0) target = $region5
  $region4: #{_forward_impl.1} parent=0 // pred_region
    _
  $region5: #{_forward_impl.1} parent=0 // pred_fallthru
    _
  // Predicated region
  $region6: #{_forward_impl.1} parent=0 // pred_check
    _
  $region7: #{_forward_impl.1} parent=0 // pred_check_branch
    %19 = sbr.rel (0) target = $region9
  $region8: #{_forward_impl.1} parent=0 // pred_region
    _
  $region9: #{_forward_impl.1} parent=0 // pred_fallthru
    _
  // Predicated region
  $region10: #{_forward_impl.1} parent=0 // pred_check
    _
  $region11: #{_forward_impl.1} parent=0 // pred_check_branch
    %21 = sbr.rel (0) target = $region13
  $region12: #{_forward_impl.1} parent=0 // pred_region
    _
  $region13: #{_forward_impl.1} parent=0 // pred_fallthru
    _
  // Predicated region
  $region14: #{_forward_impl.1} parent=0 // pred_check
    _
  $region15: #{_forward_impl.1} parent=0 // pred_check_branch
    %23 = sbr.rel (0) target = $region17
  $region16: #{_forward_impl.1} parent=0 // pred_region
    _
  $region17: #{_forward_impl.1} parent=0 // pred_fallthru
    _
  // Predicated region
  $region18: #{_forward_impl.1} parent=0 // pred_check
    _
  $region19: #{_forward_impl.1} parent=0 // pred_check_branch
    %25 = sbr.rel (0) target = $region21
  $region20: #{_forward_impl.1} parent=0 // pred_region
    _
  $region21: #{_forward_impl.1} parent=0 // pred_fallthru
    _
  // Predicated region
  $region22: #{_forward_impl.1} parent=0 // pred_check
    _
  $region23: #{_forward_impl.1} parent=0 // pred_check_branch
    %27 = sbr.rel (0) target = $region25
  $region24: #{_forward_impl.1} parent=0 // pred_region
    _
  $region25: #{_forward_impl.1} parent=0 // pred_fallthru
    _
  // Predicated region
  $region26: #{_forward_impl.1} parent=0 // pred_check
    _
  $region27: #{_forward_impl.1} parent=0 // pred_check_branch
    %29 = sbr.rel (0) target = $region29
  $region28: #{_forward_impl.1} parent=0 // pred_region
    _
  $region29: #{_forward_impl.1} parent=0 // pred_fallthru
    _
  // Predicated region
  $region30: #{_forward_impl.1} parent=0 // pred_check
    _
  $region31: #{_forward_impl.1} parent=0 // pred_check_branch
    %31 = sbr.rel (0) target = $region33
  $region32: #{_forward_impl.1} parent=0 // pred_region
    _
  $region33: #{_forward_impl.1} parent=0 // pred_fallthru
    _
  // Predicated region
  $region34: #{_forward_impl.1} parent=0 // pred_check
    _
  $region35: #{_forward_impl.1} parent=0 // pred_check_branch
    %33 = sbr.rel (0) target = $region37
  $region36: #{_forward_impl.1} parent=0 // pred_region
    _
  $region37: #{_forward_impl.1} parent=0 // pred_fallthru
    _
  // Predicated region
  $region38: #{_forward_impl.1} parent=0 // pred_check
    _
  $region39: #{_forward_impl.1} parent=0 // pred_check_branch
    %35 = sbr.rel (0) target = $region41
  $region40: #{_forward_impl.1} parent=0 // pred_region
    _
  $region41: #{_forward_impl.1} parent=0 // pred_fallthru
    _
  // Predicated region
  $region42: #{_forward_impl.1} parent=0 // pred_check
    _
  $region43: #{_forward_impl.1} parent=0 // pred_check_branch
    %37 = sbr.rel (0) target = $region45
  $region44: #{_forward_impl.1} parent=0 // pred_region
    _
  $region45: #{_forward_impl.1} parent=0 // pred_fallthru
    _
  %v38 = vld [vmem:[%s0] sm:$0xff]
  %v39 = vmul.f32 %v38, %v38
  %v40 = vld [vmem:[%s1] sm:$0xf]
  %v41 = vld [vmem:[%s1 + $0x4] sm:$0xf]
  %v42 = vld [vmem:[%s1 + $0x8] sm:$0xf]
  %v43 = vld [vmem:[%s1 + $0xc] sm:$0xf]
  %v44 = vld [vmem:[%s1 + $0x10] sm:$0xf]
  %v45 = vld [vmem:[%s1 + $0x14] sm:$0xf]
  %v46 = vld [vmem:[%s1 + $0x18] sm:$0xf]
  %v47 = vld [vmem:[%s1 + $0x1c] sm:$0xf]
  %v48 = vld [vmem:[%s1 + $0x20] sm:$0xf]
  %v49 = vld [vmem:[%s1 + $0x24] sm:$0xf]
  %v50 = vld [vmem:[%s1 + $0x28] sm:$0xf]
  %v51 = vld [vmem:[%s1 + $0x2c] sm:$0xf]
  %v52 = vld [vmem:[%s1 + $0x30] sm:$0xf]
  %v53 = vld [vmem:[%s1 + $0x34] sm:$0xf]
  %v54 = vld [vmem:[%s1 + $0x38] sm:$0xf]
  %v55 = vld [vmem:[%s1 + $0x3c] sm:$0xf]
  %v56 = vunpack.c.l.bf16 %v40
  %v57 = vunpack.c.l.bf16 %v41
  %v58 = vunpack.c.l.bf16 %v42
  %v59 = vunpack.c.l.bf16 %v43
  %v60 = vunpack.c.l.bf16 %v44
  %v61 = vunpack.c.l.bf16 %v45
  %v62 = vunpack.c.l.bf16 %v46
  %v63 = vunpack.c.l.bf16 %v47
  %v64 = vunpack.c.l.bf16 %v48
  %v65 = vunpack.c.l.bf16 %v49
  %v66 = vunpack.c.l.bf16 %v50
  %v67 = vunpack.c.l.bf16 %v51
  %v68 = vunpack.c.l.bf16 %v52
  %v69 = vunpack.c.l.bf16 %v53
  %v70 = vunpack.c.l.bf16 %v54
  %v71 = vunpack.c.l.bf16 %v55
  %72 = vmatprep.subr.mxu0 0.0
  %73 = vmatpush1.msra.mxu0 %v56
  %74 = vmatprep.subr.mxu0 0.0
  %75 = vmatpush1.msra.mxu0 %v57
  %76 = vmatprep.subr.mxu0 0.0
  %77 = vmatpush1.msra.mxu0 %v58
  %78 = vmatprep.subr.mxu0 0.0
  %79 = vmatpush1.msra.mxu0 %v59
  %80 = vmatprep.subr.mxu0 0.0
  %81 = vmatpush1.msra.mxu0 %v60
  %82 = vmatprep.subr.mxu0 0.0
  %83 = vmatpush1.msra.mxu0 %v61
  %84 = vmatprep.subr.mxu0 0.0
  %85 = vmatpush1.msra.mxu0 %v62
  %86 = vmatprep.subr.mxu0 0.0
  %87 = vmatpush1.msra.mxu0 %v63
  %88 = vmatprep.subr.mxu0 0.0
  %89 = vmatpush1.msra.mxu0 %v64
  %90 = vmatprep.subr.mxu0 0.0
  %91 = vmatpush1.msra.mxu0 %v65
  %92 = vmatprep.subr.mxu0 0.0
  %93 = vmatpush1.msra.mxu0 %v66
  %94 = vmatprep.subr.mxu0 0.0
  %95 = vmatpush1.msra.mxu0 %v67
  %96 = vmatprep.subr.mxu0 0.0
  %97 = vmatpush1.msra.mxu0 %v68
  %98 = vmatprep.subr.mxu0 0.0
  %99 = vmatpush1.msra.mxu0 %v69
  %100 = vmatprep.subr.mxu0 0.0
  %101 = vmatpush1.msra.mxu0 %v70
  %102 = vmatprep.subr.mxu0 0.0
  %103 = vmatpush1.msra.mxu0 %v71
  %104 = vmatprep.subr.mxu0 0.0
  %105 = vmatpush1.msra.mxu0 0.0
  %106 = vmatprep.subr.mxu0 0.0
  %107 = vmatpush1.msra.mxu0 0.0
  %108 = vmatprep.subr.mxu0 0.0
  %109 = vmatpush1.msra.mxu0 0.0
  %110 = vmatprep.subr.mxu0 0.0
  %111 = vmatpush1.msra.mxu0 0.0
  %112 = vmatprep.subr.mxu0 0.0
  %113 = vmatpush1.msra.mxu0 0.0
  %114 = vmatprep.subr.mxu0 0.0
  %115 = vmatpush1.msra.mxu0 0.0
  %116 = vmatprep.subr.mxu0 0.0
  %117 = vmatpush1.msra.mxu0 0.0
  %118 = vmatprep.subr.mxu0 0.0
  %119 = vmatpush1.msra.mxu0 0.0
  %120 = vmatprep.subr.mxu0 0.0
  %121 = vmatpush1.msra.mxu0 0.0
  %122 = vmatprep.subr.mxu0 0.0
  %123 = vmatpush1.msra.mxu0 0.0
  %124 = vmatprep.subr.mxu0 0.0
  %125 = vmatpush1.msra.mxu0 0.0
  %126 = vmatprep.subr.mxu0 0.0
  %127 = vmatpush1.msra.mxu0 0.0
  %128 = vmatprep.subr.mxu0 0.0
  %129 = vmatpush1.msra.mxu0 0.0
  %130 = vmatprep.subr.mxu0 0.0
  %131 = vmatpush1.msra.mxu0 0.0
  %132 = vmatprep.subr.mxu0 0.0
  %133 = vmatpush1.msra.mxu0 0.0
  %134 = vmatprep.subr.mxu0 0.0
  %135 = vmatpush1.msra.mxu0 0.0
  %136 = vmatprep.mubr.f32.mxu0 0.0
  %137 = vmatmul.mubr.f32.gmra.mrb[0].mxu0 %v38
  %v138 = vpop.f32.mrb[0].mxu0
  %v139 = vadd.f32 0.0, %v138
  %v140 = vpop.f32.mrb[0].mxu0
  %141 = vmatprep.mubr.f32.mxu0 0.0
  %142 = vmatmul.mubr.f32.gmra.mrb[0].mxu0 %v39
  %v143 = vpop.f32.mrb[0].mxu0
  %v144 = vadd.f32 0.0, %v143
  %v145 = vpop.f32.mrb[0].mxu0
  %146 = vdwg.mxu0
  %v147 = vmul.f32 %v139, 0.0625
  %v148 = vmul.f32 %v144, 0.0625
  %v149 = vmul.f32 %v147, %v147
  %v150 = vsub.f32 %v148, %v149
  %v151 = vsub.f32 %v38, %v147
  %v152 = vadd.f32 %v150, 1e-05
  %v153 = vrsqrt.pop %v152
  %v154 = vmul.f32 %v151, %v153
  %v155 = vld [vmem:[%s3] sm:$0xff]
  %v156 = vmul.f32 %v154, %v155
  %v157 = vld [vmem:[%s4] sm:$0xff]
  %v158 = vadd.f32 %v156, %v157
  %v159 = vmul.f32 %v158, 0.5
  %v160 = vmul.f32 %v158, 0.70710677
  %v161 = verf.f32.pop %v160
  %v162 = vadd.f32 %v161, 1.0
  %v163 = vmul.f32 %v159, %v162
  %164 = vrot.lane.b32.xlu0 %v163, 17
  %v165 = vpop.permute.xlu0 %164
  %166 = vrot.lane.b32.xlu0 %v163, 1
  %v167 = vpop.permute.xlu0 %166
  %168 = vrot.lane.b32.xlu0 %v163, 113
  %v169 = vpop.permute.xlu0 %168
  %170 = vrot.lane.b32.xlu0 %v163, 16
  %v171 = vpop.permute.xlu0 %170
  %172 = vrot.lane.b32.xlu0 %v163, 112
  %v173 = vpop.permute.xlu0 %172
  %174 = vrot.lane.b32.xlu0 %v163, 15
  %v175 = vpop.permute.xlu0 %174
  %176 = vrot.lane.b32.xlu0 %v163, 127
  %v177 = vpop.permute.xlu0 %176
  %178 = vrot.lane.b32.xlu0 %v163, 111
  %v179 = vpop.permute.xlu0 %178
  %v180 = vld [vmem:[%s2] sm:$0xff]
  %v181 = vld [vmem:[%s2 + $0x8] sm:$0xff]
  %v182 = vld [vmem:[%s2 + $0x10] sm:$0xff]
  %v183 = vld [vmem:[%s2 + $0x18] sm:$0xff]
  %v184 = vld [vmem:[%s2 + $0x20] sm:$0xff]
  %v185 = vld [vmem:[%s2 + $0x28] sm:$0xff]
  %v186 = vld [vmem:[%s2 + $0x30] sm:$0xff]
  %v187 = vld [vmem:[%s2 + $0x38] sm:$0xff]
  %v188 = vld [vmem:[%s2 + $0x40] sm:$0xff]
  %v189 = vmul.f32 %v165, %v180
  %v190 = vmul.f32 %v167, %v181
  %v191 = vmul.f32 %v169, %v182
  %v192 = vmul.f32 %v171, %v183
  %v193 = vmul.f32 %v163, %v184
  %v194 = vmul.f32 %v173, %v185
  %v195 = vmul.f32 %v175, %v186
  %v196 = vmul.f32 %v177, %v187
  %v197 = vmul.f32 %v179, %v188
  %v198 = vld [vmem:[%s7] sm:$0xff]
  %v199 = vld [vmem:[%s8] sm:$0xff]
  %vm200 = vcmask 588800
  %v202 = vsel %vm200, %v198, 0
  %204 = vmatprep.subr.mxu0 0.0
  %205 = vmatpush1.msra.mxu0 %v189
  %206 = vmatprep.subr.mxu0 0.0
  %207 = vmatpush1.msra.mxu0 %v190
  %208 = vmatprep.subr.mxu0 0.0
  %209 = vmatpush1.msra.mxu0 %v191
  %210 = vmatprep.subr.mxu0 0.0
  %211 = vmatpush1.msra.mxu0 %v192
  %212 = vmatprep.subr.mxu0 0.0
  %213 = vmatpush1.msra.mxu0 %v193
  %214 = vmatprep.subr.mxu0 0.0
  %215 = vmatpush1.msra.mxu0 %v194
  %216 = vmatprep.subr.mxu0 0.0
  %217 = vmatpush1.msra.mxu0 %v195
  %218 = vmatprep.subr.mxu0 0.0
  %219 = vmatpush1.msra.mxu0 %v196
  %220 = vmatprep.subr.mxu0 0.0
  %221 = vmatpush1.msra.mxu0 %v197
  %222 = vmatprep.subr.mxu0 0.0
  %223 = vmatpush1.msra.mxu0 0.0
  %224 = vmatprep.subr.mxu0 0.0
  %225 = vmatpush1.msra.mxu0 0.0
  %226 = vmatprep.subr.mxu0 0.0
  %227 = vmatpush1.msra.mxu0 0.0
  %228 = vmatprep.subr.mxu0 0.0
  %229 = vmatpush1.msra.mxu0 0.0
  %230 = vmatprep.subr.mxu0 0.0
  %231 = vmatpush1.msra.mxu0 0.0
  %232 = vmatprep.subr.mxu0 0.0
  %233 = vmatpush1.msra.mxu0 0.0
  %234 = vmatprep.subr.mxu0 0.0
  %235 = vmatpush1.msra.mxu0 0.0
  %236 = vmatprep.subr.mxu0 0.0
  %237 = vmatpush1.msra.mxu0 0.0
  %238 = vmatprep.subr.mxu0 0.0
  %239 = vmatpush1.msra.mxu0 0.0
  %240 = vmatprep.subr.mxu0 0.0
  %241 = vmatpush1.msra.mxu0 0.0
  %242 = vmatprep.subr.mxu0 0.0
  %243 = vmatpush1.msra.mxu0 0.0
  %244 = vmatprep.subr.mxu0 0.0
  %245 = vmatpush1.msra.mxu0 0.0
  %246 = vmatprep.subr.mxu0 0.0
  %247 = vmatpush1.msra.mxu0 0.0
  %248 = vmatprep.subr.mxu0 0.0
  %249 = vmatpush1.msra.mxu0 0.0
  %250 = vmatprep.subr.mxu0 0.0
  %251 = vmatpush1.msra.mxu0 0.0
  %252 = vmatprep.subr.mxu0 0.0
  %253 = vmatpush1.msra.mxu0 0.0
  %254 = vmatprep.subr.mxu0 0.0
  %255 = vmatpush1.msra.mxu0 0.0
  %256 = vmatprep.subr.mxu0 0.0
  %257 = vmatpush1.msra.mxu0 0.0
  %258 = vmatprep.subr.mxu0 0.0
  %259 = vmatpush1.msra.mxu0 0.0
  %260 = vmatprep.subr.mxu0 0.0
  %261 = vmatpush1.msra.mxu0 0.0
  %262 = vmatprep.subr.mxu0 0.0
  %263 = vmatpush1.msra.mxu0 0.0
  %264 = vmatprep.subr.mxu0 0.0
  %265 = vmatpush1.msra.mxu0 0.0
  %266 = vmatprep.subr.mxu0 0.0
  %267 = vmatpush1.msra.mxu0 0.0
  %268 = vmatprep.mubr.f32.mxu0 0.0
  %269 = vmatmul.mubr.f32.gmra.mrb[0].mxu0 %v202
  %v270 = vpop.f32.mrb[0].mxu0
  %v271 = vadd.f32 %v199, %v270
  %v272 = vpop.f32.mrb[0].mxu0
  %273 = vdwg.mxu0
  %v274 = vmul.f32 %v271, %v271
  %275 = vmatprep.subr.mxu0 0.0
  %276 = vmatpush1.msra.mxu0 %v56
  %277 = vmatprep.subr.mxu0 0.0
  %278 = vmatpush1.msra.mxu0 %v57
  %279 = vmatprep.subr.mxu0 0.0
  %280 = vmatpush1.msra.mxu0 %v58
  %281 = vmatprep.subr.mxu0 0.0
  %282 = vmatpush1.msra.mxu0 %v59
  %283 = vmatprep.subr.mxu0 0.0
  %284 = vmatpush1.msra.mxu0 %v60
  %285 = vmatprep.subr.mxu0 0.0
  %286 = vmatpush1.msra.mxu0 %v61
  %287 = vmatprep.subr.mxu0 0.0
  %288 = vmatpush1.msra.mxu0 %v62
  %289 = vmatprep.subr.mxu0 0.0
  %290 = vmatpush1.msra.mxu0 %v63
  %291 = vmatprep.subr.mxu0 0.0
  %292 = vmatpush1.msra.mxu0 %v64
  %293 = vmatprep.subr.mxu0 0.0
  %294 = vmatpush1.msra.mxu0 %v65
  %295 = vmatprep.subr.mxu0 0.0
  %296 = vmatpush1.msra.mxu0 %v66
  %297 = vmatprep.subr.mxu0 0.0
  %298 = vmatpush1.msra.mxu0 %v67
  %299 = vmatprep.subr.mxu0 0.0
  %300 = vmatpush1.msra.mxu0 %v68
  %301 = vmatprep.subr.mxu0 0.0
  %302 = vmatpush1.msra.mxu0 %v69
  %303 = vmatprep.subr.mxu0 0.0
  %304 = vmatpush1.msra.mxu0 %v70
  %305 = vmatprep.subr.mxu0 0.0
  %306 = vmatpush1.msra.mxu0 %v71
  %307 = vmatprep.subr.mxu0 0.0
  %308 = vmatpush1.msra.mxu0 0.0
  %309 = vmatprep.subr.mxu0 0.0
  %310 = vmatpush1.msra.mxu0 0.0
  %311 = vmatprep.subr.mxu0 0.0
  %312 = vmatpush1.msra.mxu0 0.0
  %313 = vmatprep.subr.mxu0 0.0
  %314 = vmatpush1.msra.mxu0 0.0
  %315 = vmatprep.subr.mxu0 0.0
  %316 = vmatpush1.msra.mxu0 0.0
  %317 = vmatprep.subr.mxu0 0.0
  %318 = vmatpush1.msra.mxu0 0.0
  %319 = vmatprep.subr.mxu0 0.0
  %320 = vmatpush1.msra.mxu0 0.0
  %321 = vmatprep.subr.mxu0 0.0
  %322 = vmatpush1.msra.mxu0 0.0
  %323 = vmatprep.subr.mxu0 0.0
  %324 = vmatpush1.msra.mxu0 0.0
  %325 = vmatprep.subr.mxu0 0.0
  %326 = vmatpush1.msra.mxu0 0.0
  %327 = vmatprep.subr.mxu0 0.0
  %328 = vmatpush1.msra.mxu0 0.0
  %329 = vmatprep.subr.mxu0 0.0
  %330 = vmatpush1.msra.mxu0 0.0
  %331 = vmatprep.subr.mxu0 0.0
  %332 = vmatpush1.msra.mxu0 0.0
  %333 = vmatprep.subr.mxu0 0.0
  %334 = vmatpush1.msra.mxu0 0.0
  %335 = vmatprep.subr.mxu0 0.0
  %336 = vmatpush1.msra.mxu0 0.0
  %337 = vmatprep.subr.mxu0 0.0
  %338 = vmatpush1.msra.mxu0 0.0
  %339 = vmatprep.mubr.f32.mxu0 0.0
  %340 = vmatmul.mubr.f32.gmra.mrb[0].mxu0 %v271
  %v341 = vpop.f32.mrb[0].mxu0
  %v342 = vadd.f32 0.0, %v341
  %v343 = vpop.f32.mrb[0].mxu0
  %344 = vmatprep.mubr.f32.mxu0 0.0
  %345 = vmatmul.mubr.f32.gmra.mrb[0].mxu0 %v274
  %v346 = vpop.f32.mrb[0].mxu0
  %v347 = vadd.f32 0.0, %v346
  %v348 = vpop.f32.mrb[0].mxu0
  %349 = vdwg.mxu0
  %v350 = vmul.f32 %v342, 0.0625
  %v351 = vmul.f32 %v347, 0.0625
  %v352 = vmul.f32 %v350, %v350
  %v353 = vsub.f32 %v351, %v352
  %v354 = vsub.f32 %v271, %v350
  %v355 = vadd.f32 %v353, 1e-05
  %v356 = vrsqrt.pop %v355
  %v357 = vmul.f32 %v354, %v356
  %v358 = vld [vmem:[%s5] sm:$0xff]
  %v359 = vmul.f32 %v357, %v358
  %v360 = vld [vmem:[%s6] sm:$0xff]
  %v361 = vadd.f32 %v359, %v360
  %v362 = vmul.f32 %v361, 0.5
  %v363 = vmul.f32 %v361, 0.70710677
  %v364 = verf.f32.pop %v363
  %v365 = vadd.f32 %v364, 1.0
  %v366 = vmul.f32 %v362, %v365
  %367 = vrot.lane.b32.xlu0 %v366, 17
  %v368 = vpop.permute.xlu0 %367
  %369 = vrot.lane.b32.xlu0 %v366, 1
  %v370 = vpop.permute.xlu0 %369
  %371 = vrot.lane.b32.xlu0 %v366, 113
  %v372 = vpop.permute.xlu0 %371
  %373 = vrot.lane.b32.xlu0 %v366, 16
  %v374 = vpop.permute.xlu0 %373
  %375 = vrot.lane.b32.xlu0 %v366, 112
  %v376 = vpop.permute.xlu0 %375
  %377 = vrot.lane.b32.xlu0 %v366, 15
  %v378 = vpop.permute.xlu0 %377
  %379 = vrot.lane.b32.xlu0 %v366, 127
  %v380 = vpop.permute.xlu0 %379
  %381 = vrot.lane.b32.xlu0 %v366, 111
  %v382 = vpop.permute.xlu0 %381
  %v383 = vmul.f32 %v368, %v180
  %v384 = vmul.f32 %v370, %v181
  %v385 = vmul.f32 %v372, %v182
  %v386 = vmul.f32 %v374, %v183
  %v387 = vmul.f32 %v366, %v184
  %v388 = vmul.f32 %v376, %v185
  %v389 = vmul.f32 %v378, %v186
  %v390 = vmul.f32 %v380, %v187
  %v391 = vmul.f32 %v382, %v188
  %v392 = vld [vmem:[%s9] sm:$0xff]
  %v393 = vld [vmem:[%s10] sm:$0xff]
  %v395 = vsel %vm200, %v392, 0
  %397 = vmatprep.subr.mxu0 0.0
  %398 = vmatpush1.msra.mxu0 %v383
  %399 = vmatprep.subr.mxu0 0.0
  %400 = vmatpush1.msra.mxu0 %v384
  %401 = vmatprep.subr.mxu0 0.0
  %402 = vmatpush1.msra.mxu0 %v385
  %403 = vmatprep.subr.mxu0 0.0
  %404 = vmatpush1.msra.mxu0 %v386
  %405 = vmatprep.subr.mxu0 0.0
  %406 = vmatpush1.msra.mxu0 %v387
  %407 = vmatprep.subr.mxu0 0.0
  %408 = vmatpush1.msra.mxu0 %v388
  %409 = vmatprep.subr.mxu0 0.0
  %410 = vmatpush1.msra.mxu0 %v389
  %411 = vmatprep.subr.mxu0 0.0
  %412 = vmatpush1.msra.mxu0 %v390
  %413 = vmatprep.subr.mxu0 0.0
  %414 = vmatpush1.msra.mxu0 %v391
  %415 = vmatprep.subr.mxu0 0.0
  %416 = vmatpush1.msra.mxu0 0.0
  %417 = vmatprep.subr.mxu0 0.0
  %418 = vmatpush1.msra.mxu0 0.0
  %419 = vmatprep.subr.mxu0 0.0
  %420 = vmatpush1.msra.mxu0 0.0
  %421 = vmatprep.subr.mxu0 0.0
  %422 = vmatpush1.msra.mxu0 0.0
  %423 = vmatprep.subr.mxu0 0.0
  %424 = vmatpush1.msra.mxu0 0.0
  %425 = vmatprep.subr.mxu0 0.0
  %426 = vmatpush1.msra.mxu0 0.0
  %427 = vmatprep.subr.mxu0 0.0
  %428 = vmatpush1.msra.mxu0 0.0
  %429 = vmatprep.subr.mxu0 0.0
  %430 = vmatpush1.msra.mxu0 0.0
  %431 = vmatprep.subr.mxu0 0.0
  %432 = vmatpush1.msra.mxu0 0.0
  %433 = vmatprep.subr.mxu0 0.0
  %434 = vmatpush1.msra.mxu0 0.0
  %435 = vmatprep.subr.mxu0 0.0
  %436 = vmatpush1.msra.mxu0 0.0
  %437 = vmatprep.subr.mxu0 0.0
  %438 = vmatpush1.msra.mxu0 0.0
  %439 = vmatprep.subr.mxu0 0.0
  %440 = vmatpush1.msra.mxu0 0.0
  %441 = vmatprep.subr.mxu0 0.0
  %442 = vmatpush1.msra.mxu0 0.0
  %443 = vmatprep.subr.mxu0 0.0
  %444 = vmatpush1.msra.mxu0 0.0
  %445 = vmatprep.subr.mxu0 0.0
  %446 = vmatpush1.msra.mxu0 0.0
  %447 = vmatprep.subr.mxu0 0.0
  %448 = vmatpush1.msra.mxu0 0.0
  %449 = vmatprep.subr.mxu0 0.0
  %450 = vmatpush1.msra.mxu0 0.0
  %451 = vmatprep.subr.mxu0 0.0
  %452 = vmatpush1.msra.mxu0 0.0
  %453 = vmatprep.subr.mxu0 0.0
  %454 = vmatpush1.msra.mxu0 0.0
  %455 = vmatprep.subr.mxu0 0.0
  %456 = vmatpush1.msra.mxu0 0.0
  %457 = vmatprep.subr.mxu0 0.0
  %458 = vmatpush1.msra.mxu0 0.0
  %459 = vmatprep.subr.mxu0 0.0
  %460 = vmatpush1.msra.mxu0 0.0
  %461 = vmatprep.mubr.f32.mxu0 0.0
  %462 = vmatmul.mubr.f32.gmra.mrb[0].mxu0 %v395
  %v463 = vpop.f32.mrb[0].mxu0
  %v464 = vadd.f32 %v393, %v463
  %v465 = vpop.f32.mrb[0].mxu0
  %466 = vdwg.mxu0
  %v467 = vadd.f32 %v464, %v38
  %468 = vst [vmem:[%s11] sm:$0xff] %v467
  // Predicated region
  $region46: #{_forward_impl.1} parent=0 // pred_check
    _
  $region47: #{_forward_impl.1} parent=0 // pred_check_branch
    %470 = sbr.rel (0) target = $region49
  $region48: #{_forward_impl.1} parent=0 // pred_region
    _
  $region49: #{_forward_impl.1} parent=0 // pred_fallthru
    _
  // Predicated region
  $region50: #{_forward_impl.1} parent=0 // pred_check
    _
  $region51: #{_forward_impl.1} parent=0 // pred_check_branch
    %472 = sbr.rel (0) target = $region53
  $region52: #{_forward_impl.1} parent=0 // pred_region
    _
  $region53: #{_forward_impl.1} parent=0 // pred_fallthru
    _

</llo_original>
